<compile_context>
chip_gen: v7x
topology: tpu7x:2x2x1
jax: 0.10.0
libtpu: 0.0.40
codegen_flags: <defaults>
</compile_context>

<pallas_src>
import functools

import jax
import jax.numpy as jnp
from jax import lax
from jax.experimental import pallas as pl
from jax.experimental.pallas import tpu as pltpu

LANE = 128
SUBLANE = 8
NEG_INF = -1e30

# Conservative per-call VMEM budget for the pipelined tiles (double buffers +
# scratch): fits v5e's 16 MiB scoped default (once vmem_limit_bytes is raised
# slightly) and leaves ample headroom on v7x's 64 MiB physical VMEM.
_VMEM_TILE_BUDGET = 20 * 1024 * 1024
_MAX_TILE_K = 1024      # stream W/x over a K grid axis once F_pad > 2 * this
_MAX_TILE_B = 1024


def _round_up(x, m):
    return (x + m - 1) // m * m


def _pad_cast_2d(a, shape, dtype):
    """Cast + pad in a single op; pure astype (no pad copy) when already aligned."""
    if tuple(a.shape) == tuple(shape):
        return a.astype(dtype)
    out = jnp.zeros(shape, dtype)
    return out.at[: a.shape[0], : a.shape[1]].set(a.astype(dtype))


def logreg_kernel(x_ref, w_ref, b_ref, o_ref, acc_ref, *, n_classes):
    """One (batch-tile, K-tile) grid step.

    x_ref: [tile_b, tile_k] bf16      w_ref: [C_pad, tile_k] bf16
    b_ref: [1, C_pad] f32 (padded classes carry -1e30)
    o_ref: [tile_b, C] f32            acc_ref: [tile_b, C_pad] f32 scratch
    """
    k = pl.program_id(1)

    @pl.when(k == 0)
    def _():
        acc_ref[...] = jnp.zeros_like(acc_ref)

    # Contract the feature axis of both operands directly on the MXU (no
    # in-kernel transpose); bf16 inputs, f32 accumulation.
    acc_ref[...] += lax.dot_general(
        x_ref[...], w_ref[...],
        dimension_numbers=(((1,), (1,)), ((), ())),
        preferred_element_type=jnp.float32,
    )

    @pl.when(k == pl.num_programs(1) - 1)
    def _():
        logits = acc_ref[...] + b_ref[...]            # [tile_b, C_pad], f32
        # Numerically stable softmax in f32. Padded class columns carry
        # bias = -1e30, so exp(logit - max) underflows to exactly 0.
        m = jnp.max(logits, axis=-1, keepdims=True)
        e = jnp.exp(logits - m)
        denom = jnp.sum(e, axis=-1, keepdims=True)
        probs = e / denom                             # exact divide (1 per row)
        o_ref[...] = probs[:, :n_classes].astype(o_ref.dtype)


@jax.jit
def logistic_regression_forward(x, w, b):
    B, F = x.shape
    C, Fw = w.shape
    assert F == Fw, "feature dims of x and w must match"
    assert b.shape == (C,)

    C_pad = _round_up(C, LANE)

    # --- K (feature) tiling: resident W for small F, K-streamed for large F. ---
    F_pad = _round_up(F, LANE)
    if F_pad <= 2 * _MAX_TILE_K:
        tile_k = F_pad
    else:
        tile_k = _MAX_TILE_K
        F_pad = _round_up(F, tile_k)
    num_k = F_pad // tile_k

    # --- Batch tiling: enough grid steps for v7x's 2 TCs + VMEM budget cap. ---
    b8 = _round_up(B, SUBLANE)
    steps = min(8, max(2, pl.cdiv(b8, 256))) if b8 >= 128 else 1
    tile_b = _round_up(pl.cdiv(b8, steps), SUBLANE)

    bytes_per_row = (2 * tile_k * 2        # x tile, double-buffered, bf16
                     + 2 * C * 4           # out tile, double-buffered, f32
                     + C_pad * 4)          # accumulator scratch, f32
    fixed_bytes = 2 * C_pad * tile_k * 2 + 2 * C_pad * 4   # W (2 bufs) + bias
    rows_cap = max(SUBLANE,
                   (_VMEM_TILE_BUDGET - fixed_bytes) // max(1, bytes_per_row))
    rows_cap = max(SUBLANE, rows_cap // SUBLANE * SUBLANE)

    tile_b = max(SUBLANE, min(tile_b, _MAX_TILE_B, rows_cap))
    B_pad = _round_up(b8, tile_b)
    num_b = B_pad // tile_b

    # --- Pad / cast inputs (no extra copy when already aligned). ---
    x_p = _pad_cast_2d(x, (B_pad, F_pad), jnp.bfloat16)
    w_p = _pad_cast_2d(w, (C_pad, F_pad), jnp.bfloat16)
    b_p = jnp.full((1, C_pad), NEG_INF, jnp.float32).at[0, :C].set(
        b.astype(jnp.float32))

    vmem_need = tile_b * bytes_per_row + fixed_bytes
    vmem_limit = int(min(48 * 2**20, max(2 * vmem_need, 8 * 2**20)))

    cost = pl.CostEstimate(
        flops=2 * B_pad * F_pad * C_pad,
        transcendentals=B_pad * C_pad,
        bytes_accessed=2 * (B_pad * F_pad + C_pad * F_pad) + 4 * B_pad * C,
    )

    out = pl.pallas_call(
        functools.partial(logreg_kernel, n_classes=C),
        out_shape=jax.ShapeDtypeStruct((B_pad, C), jnp.float32),
        grid=(num_b, num_k),
        in_specs=[
            pl.BlockSpec((tile_b, tile_k), lambda i, k: (i, k)),   # x: B x K tiles
            pl.BlockSpec((C_pad, tile_k), lambda i, k: (0, k)),    # W: K-streamed
            pl.BlockSpec((1, C_pad), lambda i, k: (0, 0)),         # bias: resident
        ],
        out_specs=pl.BlockSpec((tile_b, C), lambda i, k: (i, 0)),  # un-padded C
        scratch_shapes=[pltpu.VMEM((tile_b, C_pad), jnp.float32)],
        compiler_params=pltpu.CompilerParams(
            dimension_semantics=("parallel", "arbitrary"),
            vmem_limit_bytes=vmem_limit,
        ),
        cost_estimate=cost,
    )(x_p, w_p, b_p)

    return out[:B] if B_pad != B else out


if __name__ == "__main__":
    num_classes = 2
    n_features = 32
    batch = 8

    key = jax.random.PRNGKey(0)
    kx, kw, kb = jax.random.split(key, 3)

    # Deterministic init mimicking nn.Linear uniform(-1/sqrt(F), 1/sqrt(F)).
    bound = 1.0 / jnp.sqrt(jnp.float32(n_features))
    w = jax.random.uniform(kw, (num_classes, n_features), jnp.float32, -bound, bound)
    b = jax.random.uniform(kb, (num_classes,), jnp.float32, -bound, bound)
    x = jax.random.normal(kx, (batch, n_features), jnp.float32)

    out = jax.block_until_ready(logistic_regression_forward(x, w, b))
    assert out.shape == (batch, num_classes)

    # Reference at the same bf16 input precision (f32 accumulation + softmax),
    # so the kernel itself is checked tightly.
    xb = x.astype(jnp.bfloat16).astype(jnp.float32)
    wb = w.astype(jnp.bfloat16).astype(jnp.float32)
    ref = jax.nn.softmax(xb @ wb.T + b, axis=-1)
    err = jnp.max(jnp.abs(out - ref))
    assert jnp.allclose(out, ref, atol=1e-4, rtol=1e-4), f"max abs err {err}"

    # Sanity vs the full-f32 reference (difference is bf16 input quantization only).
    ref_f32 = jax.nn.softmax(x @ w.T + b, axis=-1)
    assert jnp.allclose(out, ref_f32, atol=5e-2), "bf16 input quantization too large"

    print("KERNEL_OK")
</pallas_src>

<mosaic_0001>
module attributes {stable_mosaic.version = 11 : i64} {
  func.func @logreg_kernel(%arg0: i32, %arg1: i32, %arg2: memref<8x128xbf16, #tpu.memory_space<vmem>>, %arg3: memref<128x128xbf16, #tpu.memory_space<vmem>>, %arg4: memref<1x128xf32, #tpu.memory_space<vmem>>, %arg5: memref<8x2xf32, #tpu.memory_space<vmem>>, %arg6: memref<8x128xf32, #tpu.memory_space<vmem>>) attributes {dimension_semantics = [#tpu.dimension_semantics<parallel>, #tpu.dimension_semantics<arbitrary>], iteration_bounds = array<i64: 1, 1>, scalar_prefetch = 0 : i64, scratch_operands = 1 : i64, tpu.core_type = #tpu.core_type<tc>, window_params = [{transform_indices = @transform_0, window_bounds = array<i64: 8, 128>}, {transform_indices = @transform_1, window_bounds = array<i64: 128, 128>}, {pipeline_mode = #tpu.pipeline_mode<synchronous>, transform_indices = @transform_2, window_bounds = array<i64: 1, 128>}, {transform_indices = @transform_3, window_bounds = array<i64: 8, 2>}]} {
    %c0_i32 = arith.constant 0 : i32
    %0 = arith.cmpi eq, %arg1, %c0_i32 : i32
    %1 = arith.extui %0 : i1 to i32
    %c0_i32_0 = arith.constant 0 : i32
    %2 = arith.cmpi ne, %1, %c0_i32_0 : i32
    scf.if %2 {
      %cst_10 = arith.constant 0.000000e+00 : f32
      %12 = vector.broadcast %cst_10 : f32 to vector<8x128xf32>
      %c0_11 = arith.constant 0 : index
      %c0_12 = arith.constant 0 : index
      %13 = vector.load %arg6[%c0_11, %c0_12] : memref<8x128xf32, #tpu.memory_space<vmem>>, vector<8x128xf32>
      tpu.vector_store %arg6[%c0_11, %c0_12], %12 {strides = array<i32>} : memref<8x128xf32, #tpu.memory_space<vmem>>, vector<8x128xf32>,
    } else {
    }
    %c0 = arith.constant 0 : index
    %c0_1 = arith.constant 0 : index
    %3 = vector.load %arg6[%c0, %c0_1] : memref<8x128xf32, #tpu.memory_space<vmem>>, vector<8x128xf32>
    %c0_2 = arith.constant 0 : index
    %c0_3 = arith.constant 0 : index
    %4 = vector.load %arg2[%c0_2, %c0_3] : memref<8x128xbf16, #tpu.memory_space<vmem>>, vector<8x128xbf16>
    %c0_4 = arith.constant 0 : index
    %c0_5 = arith.constant 0 : index
    %5 = vector.load %arg3[%c0_4, %c0_5] : memref<128x128xbf16, #tpu.memory_space<vmem>>, vector<128x128xbf16>
    %cst = arith.constant dense<0.000000e+00> : vector<8x128xf32>
    %6 = tpu.matmul %4, %5, %cst {dimension_numbers = #tpu.dot_dimension_numbers<[1], [1], [0], [0], [0, 0, 1, 0], [], []>} : vector<8x128xbf16>, vector<128x128xbf16>, vector<8x128xf32> -> vector<8x128xf32>
    %7 = arith.addf %3, %6 : vector<8x128xf32>
    %c0_6 = arith.constant 0 : index
    %c0_7 = arith.constant 0 : index
    %8 = vector.load %arg6[%c0_6, %c0_7] : memref<8x128xf32, #tpu.memory_space<vmem>>, vector<8x128xf32>
    tpu.vector_store %arg6[%c0_6, %c0_7], %7 {strides = array<i32>} : memref<8x128xf32, #tpu.memory_space<vmem>>, vector<8x128xf32>,
    %c0_i32_8 = arith.constant 0 : i32
    %9 = arith.cmpi eq, %arg1, %c0_i32_8 : i32
    %10 = arith.extui %9 : i1 to i32
    %c0_i32_9 = arith.constant 0 : i32
    %11 = arith.cmpi ne, %10, %c0_i32_9 : i32
    scf.if %11 {
      %c0_10 = arith.constant 0 : index
      %c0_11 = arith.constant 0 : index
      %12 = vector.load %arg6[%c0_10, %c0_11] : memref<8x128xf32, #tpu.memory_space<vmem>>, vector<8x128xf32>
      %c0_12 = arith.constant 0 : index
      %c0_13 = arith.constant 0 : index
      %13 = vector.load %arg4[%c0_12, %c0_13] : memref<1x128xf32, #tpu.memory_space<vmem>>, vector<1x128xf32>
      %14 = vector.broadcast %13 : vector<1x128xf32> to vector<8x128xf32>
      %15 = arith.addf %12, %14 : vector<8x128xf32>
      %cst_14 = arith.constant dense<0xFF800000> : vector<8xf32>
      %16 = vector.multi_reduction <maximumf>, %15, %cst_14 [1] : vector<8x128xf32> to vector<8xf32>
      %17 = vector.shape_cast %16 : vector<8xf32> to vector<8x1xf32>
      %18 = vector.broadcast %17 : vector<8x1xf32> to vector<8x128xf32>
      %19 = arith.subf %15, %18 : vector<8x128xf32>
      %20 = math.exp %19 : vector<8x128xf32>
      %cst_15 = arith.constant dense<0.000000e+00> : vector<8xf32>
      %21 = vector.multi_reduction <add>, %20, %cst_15 [1] : vector<8x128xf32> to vector<8xf32>
      %22 = vector.shape_cast %21 : vector<8xf32> to vector<8x1xf32>
      %23 = vector.broadcast %22 : vector<8x1xf32> to vector<8x128xf32>
      %24 = arith.divf %20, %23 : vector<8x128xf32>
      %25 = vector.extract_strided_slice %24 {offsets = [0, 0], sizes = [8, 2], strides = [1, 1]} : vector<8x128xf32> to vector<8x2xf32>
      %c0_16 = arith.constant 0 : index
      %c0_17 = arith.constant 0 : index
      %26 = vector.load %arg5[%c0_16, %c0_17] : memref<8x2xf32, #tpu.memory_space<vmem>>, vector<8x2xf32>
      tpu.vector_store %arg5[%c0_16, %c0_17], %25 {strides = array<i32>} : memref<8x2xf32, #tpu.memory_space<vmem>>, vector<8x2xf32>,
    } else {
    }
    return
  }
  func.func @transform_0(%arg0: i32, %arg1: i32) -> (i32, i32) {
    %c0_i32 = arith.constant 0 : i32
    return %arg0, %arg1 : i32, i32
  }
  func.func @transform_1(%arg0: i32, %arg1: i32) -> (i32, i32) {
    %c0_i32 = arith.constant 0 : i32
    %c0_i32_0 = arith.constant 0 : i32
    return %c0_i32, %arg1 : i32, i32
  }
  func.func @transform_2(%arg0: i32, %arg1: i32) -> (i32, i32) {
    %c0_i32 = arith.constant 0 : i32
    %c0_i32_0 = arith.constant 0 : i32
    %c0_i32_1 = arith.constant 0 : i32
    return %c0_i32, %c0_i32_0 : i32, i32
  }
  func.func @transform_3(%arg0: i32, %arg1: i32) -> (i32, i32) {
    %c0_i32 = arith.constant 0 : i32
    %c0_i32_0 = arith.constant 0 : i32
    return %arg0, %c0_i32 : i32, i32
  }
}

</mosaic_0001>

<llo_original>
// kernel: logistic_regression_forward.1
$region0: #{logistic_regression_forward.1}
  #allocation0 [shape = 'u32[]', space=smem, size = 0x4, offset = 0x4, fixed_abs, tag = 'smem constant byte address 0x4 - core index']
  #allocation1 [shape = 'u32[144,128]{1,0:T(1,128)}', space=vmem, size = 0x12000, scoped, tag = 'internal scratch']
  #allocation2 [shape = 'f32[8,128]{1,0:T(8,128)}', space=vmem, size = 0x1000, scoped, tag = 'scratch operand']
  %s0 = inlined_call_operand.vmem [shape: bf16[8,128], index: 0, kind: input, shape index: {}]
  %s1 = inlined_call_operand.vmem [shape: bf16[128,128], index: 1, kind: input, shape index: {}]
  %s2 = inlined_call_operand.vmem [shape: f32[1,128], index: 2, kind: input, shape index: {}]
  %s3 = inlined_call_operand.vmem [shape: f32[8,2], index: 3, kind: output, shape index: {}]
  %s4 = sld [smem:[#allocation0]]
  $region30: #{logistic_regression_forward.1} parent=0
    _
  %s6 = ssub.s32 1, %s4
  %s7 = scalar_select 0, %s6, %s4
  // Predicated region
  $region2: #{logistic_regression_forward.1} parent=0 // pred_check
    _
  $region3: #{logistic_regression_forward.1} parent=0 // pred_check_branch
    %9 = sbr.rel (0) target = $region5
  $region4: #{logistic_regression_forward.1} parent=0 // pred_region
    _
  $region5: #{logistic_regression_forward.1} parent=0 // pred_fallthru
    _
  // Predicated region
  $region6: #{logistic_regression_forward.1} parent=0 // pred_check
    _
  $region7: #{logistic_regression_forward.1} parent=0 // pred_check_branch
    %11 = sbr.rel (0) target = $region9
  $region8: #{logistic_regression_forward.1} parent=0 // pred_region
    _
  $region9: #{logistic_regression_forward.1} parent=0 // pred_fallthru
    _
  // Predicated region
  $region10: #{logistic_regression_forward.1} parent=0 // pred_check
    _
  $region11: #{logistic_regression_forward.1} parent=0 // pred_check_branch
    %13 = sbr.rel (0) target = $region13
  $region12: #{logistic_regression_forward.1} parent=0 // pred_region
    _
  $region13: #{logistic_regression_forward.1} parent=0 // pred_fallthru
    _
  %p15 = scmp.eq.s32.totalorder 0, 0
  // Predicated region
  $region14: #{logistic_regression_forward.1} parent=0 // pred_check
    %p16 = pneg %p15
  $region15: #{logistic_regression_forward.1} parent=0 // pred_check_branch
    %18 = sbr.rel (%p16) target = $region17
  $region16: #{logistic_regression_forward.1} parent=0 // pred_region
    %19 = vst [vmem:[#allocation2] sm:$0xff] 0.0
  $region17: #{logistic_regression_forward.1} parent=0 // pred_fallthru
    _
  %v20 = vld [vmem:[#allocation2] sm:$0xff]
  %v21 = vld [vmem:[%s0] sm:$0xf]
  %v22 = vld [vmem:[%s1] sm:$0xf]
  %v23 = vld [vmem:[%s1 + $0x4] sm:$0xf]
  %v24 = vld [vmem:[%s1 + $0x8] sm:$0xf]
  %v25 = vld [vmem:[%s1 + $0xc] sm:$0xf]
  %v26 = vld [vmem:[%s1 + $0x10] sm:$0xf]
  %v27 = vld [vmem:[%s1 + $0x14] sm:$0xf]
  %v28 = vld [vmem:[%s1 + $0x18] sm:$0xf]
  %v29 = vld [vmem:[%s1 + $0x1c] sm:$0xf]
  %v30 = vld [vmem:[%s1 + $0x20] sm:$0xf]
  %v31 = vld [vmem:[%s1 + $0x24] sm:$0xf]
  %v32 = vld [vmem:[%s1 + $0x28] sm:$0xf]
  %v33 = vld [vmem:[%s1 + $0x2c] sm:$0xf]
  %v34 = vld [vmem:[%s1 + $0x30] sm:$0xf]
  %v35 = vld [vmem:[%s1 + $0x34] sm:$0xf]
  %v36 = vld [vmem:[%s1 + $0x38] sm:$0xf]
  %v37 = vld [vmem:[%s1 + $0x3c] sm:$0xf]
  %v54 = vunpack.c.l.b16 %v22
  %v55 = vunpack.c.l.b16 %v23
  %v56 = vunpack.c.l.b16 %v24
  %v57 = vunpack.c.l.b16 %v25
  %v58 = vunpack.c.l.b16 %v26
  %v59 = vunpack.c.l.b16 %v27
  %v60 = vunpack.c.l.b16 %v28
  %v61 = vunpack.c.l.b16 %v29
  %v62 = vunpack.c.l.b16 %v30
  %v63 = vunpack.c.l.b16 %v31
  %v64 = vunpack.c.l.b16 %v32
  %v65 = vunpack.c.l.b16 %v33
  %v66 = vunpack.c.l.b16 %v34
  %v67 = vunpack.c.l.b16 %v35
  %v68 = vunpack.c.l.b16 %v36
  %v69 = vunpack.c.l.b16 %v37
  %v70 = vpack.c.b16 %v55, %v54
  %v71 = vpack.c.b16 %v57, %v56
  %v72 = vpack.c.b16 %v59, %v58
  %v73 = vpack.c.b16 %v61, %v60
  %v74 = vpack.c.b16 %v63, %v62
  %v75 = vpack.c.b16 %v65, %v64
  %v76 = vpack.c.b16 %v67, %v66
  %v77 = vpack.c.b16 %v69, %v68
  %86 = vmatprep.subr.bf16.mxu0 0
  %87 = vmatpush1.bf16.xpose.msra.mxu0 %v70
  %88 = vmatprep.subr.bf16.mxu0 0
  %89 = vmatpush1.bf16.xpose.msra.mxu0 %v71
  %90 = vmatprep.subr.bf16.mxu0 0
  %91 = vmatpush1.bf16.xpose.msra.mxu0 %v72
  %92 = vmatprep.subr.bf16.mxu0 0
  %93 = vmatpush1.bf16.xpose.msra.mxu0 %v73
  %94 = vmatprep.subr.bf16.mxu0 0
  %95 = vmatpush1.bf16.xpose.msra.mxu0 %v74
  %96 = vmatprep.subr.bf16.mxu0 0
  %97 = vmatpush1.bf16.xpose.msra.mxu0 %v75
  %98 = vmatprep.subr.bf16.mxu0 0
  %99 = vmatpush1.bf16.xpose.msra.mxu0 %v76
  %100 = vmatprep.subr.bf16.mxu0 0
  %101 = vmatpush1.bf16.xpose.msra.mxu0 %v77
  %102 = vmatprep.subr.bf16.mxu0 0
  %103 = vmatpush1.bf16.xpose.msra.mxu0 0
  %104 = vmatprep.subr.bf16.mxu0 0
  %105 = vmatpush1.bf16.xpose.msra.mxu0 0
  %106 = vmatprep.subr.bf16.mxu0 0
  %107 = vmatpush1.bf16.xpose.msra.mxu0 0
  %108 = vmatprep.subr.bf16.mxu0 0
  %109 = vmatpush1.bf16.xpose.msra.mxu0 0
  %110 = vmatprep.subr.bf16.mxu0 0
  %111 = vmatpush1.bf16.xpose.msra.mxu0 0
  %112 = vmatprep.subr.bf16.mxu0 0
  %113 = vmatpush1.bf16.xpose.msra.mxu0 0
  %114 = vmatprep.subr.bf16.mxu0 0
  %115 = vmatpush1.bf16.xpose.msra.mxu0 0
  %116 = vmatprep.subr.bf16.mxu0 0
  %117 = vmatpush1.bf16.xpose.msra.mxu0 0
  %118 = vmatprep.mubr.bf16.mxu0 0
  %119 = vmatmul.mubr.bf16.gmra.mrb[0].mxu0 %v21
  %v120 = vpop.f32.mrb[0].mxu0
  %v121 = vadd.f32 0.0, %v120
  %v122 = vpop.f32.mrb[0].mxu0
  %v123 = vpop.f32.mrb[0].mxu0
  %v124 = vpop.f32.mrb[0].mxu0
  %125 = vdwg.mxu0
  %v126 = vadd.f32 %v20, %v121
  %127 = vst [vmem:[#allocation2] sm:$0xff] %v126
  // Predicated region
  $region18: #{logistic_regression_forward.1} parent=0 // pred_check
    %p128 = pneg %p15
  $region19: #{logistic_regression_forward.1} parent=0 // pred_check_branch
    %130 = sbr.rel (%p128) target = $region21
  $region20: #{logistic_regression_forward.1} parent=0 // pred_region
    %v131 = vld [vmem:[#allocation2] sm:$0xff]
    %v132 = vld [vmem:[%s2] sm:$0x1]
    %v134 = vlaneseq
    %v135 = vshrl.u32 %v134, 7
    %v136 = vsub.s32 0, %v135
    %v137 = vrot.slane %v132, %v136
    %v139 = vadd.f32 %v131, %v137
    %140 = vmax.xlane.f32.xlu0 %v139
    %v141 = vpop.xlane.xlu0 %140
    %v142 = vsub.f32 %v139, %v141
    %v143 = vmul.f32 %v142, 1.442695
    %v144 = vpow.pop %v143
    %145 = vadd.xlane.f32.xlu0 %v144
    %v146 = vpop.xlane.xlu0 %145
    %v147 = vrcp.pop %v146
    %v148 = vmul.f32 %v144, %v147
    %vm149 = vcmask 15360
    %150 = vst.msk [vmem:[%s3] sm:$0xff] %vm149, %v148
  $region21: #{logistic_regression_forward.1} parent=0 // pred_fallthru
    _
  // Predicated region
  $region22: #{logistic_regression_forward.1} parent=0 // pred_check
    _
  $region23: #{logistic_regression_forward.1} parent=0 // pred_check_branch
    %152 = sbr.rel (0) target = $region25
  $region24: #{logistic_regression_forward.1} parent=0 // pred_region
    _
  $region25: #{logistic_regression_forward.1} parent=0 // pred_fallthru
    _
  // Predicated region
  $region26: #{logistic_regression_forward.1} parent=0 // pred_check
    _
  $region27: #{logistic_regression_forward.1} parent=0 // pred_check_branch
    %154 = sbr.rel (0) target = $region29
  $region28: #{logistic_regression_forward.1} parent=0 // pred_region
    _
  $region29: #{logistic_regression_forward.1} parent=0 // pred_fallthru
    _

</llo_original>
